<compile_context>
chip_gen: v5e
topology: v5e:2x2
jax: 0.10.0
libtpu: 0.0.40
codegen_flags: <defaults>
</compile_context>

<pallas_src>
import functools

import jax
import jax.numpy as jnp
from jax.experimental import pallas as pl
from jax.experimental.pallas import tpu as pltpu


def mu_sigma_kernel(r_ref, w1_ref, b1_ref, wmu_ref, bmu_ref, wsig_ref, bsig_ref,
                    mu_ref, sigma_ref):
    r = r_ref[...]

    # hidden = relu(r @ W1 + b1)   (f32 MXU accumulation, f32 epilogue)
    h = jnp.dot(r, w1_ref[...], preferred_element_type=jnp.float32) + b1_ref[...]
    h = jnp.maximum(h, 0.0)

    # mu head
    mu = jnp.dot(h, wmu_ref[...], preferred_element_type=jnp.float32) + bmu_ref[...]
    mu_ref[...] = mu.astype(mu_ref.dtype)

    # sigma head: 0.1 + 0.9 * sigmoid(.)   (sigmoid goes to the EUP slot)
    s = jnp.dot(h, wsig_ref[...], preferred_element_type=jnp.float32) + bsig_ref[...]
    sigma_ref[...] = (0.1 + 0.9 * jax.nn.sigmoid(s)).astype(sigma_ref.dtype)


def mu_sigma_encoder(r, params, *, block_batch=4096):
    """r: (batch, r_dim) float32. params: transposed weights / (1, out) biases.

    Returns (mu, sigma), each (batch, z_dim)."""
    batch, r_dim = r.shape
    z_dim = params["wmu"].shape[1]
    itemsize = jnp.dtype(r.dtype).itemsize

    # ---- batch tile --------------------------------------------------------
    tb = min(block_batch, batch)
    if batch > 8:
        # Keep >= 2 grid steps so the "parallel" axis can shard across v7x's
        # two TensorCores, and keep the tile sublane (8-row) aligned.
        tb = min(tb, -(-batch // 2))          # ceil(batch / 2)
        tb = max(8, (tb // 8) * 8)
    # else: single full-extent block (block dim == full array dim is allowed).
    grid = (pl.cdiv(batch, tb),)              # ragged last block handled by Pallas

    # ---- VMEM budget / weight buffering ------------------------------------
    weight_bytes = itemsize * (r_dim * r_dim + r_dim + 2 * (r_dim * z_dim + z_dim))
    stream_bytes = 2 * itemsize * tb * (r_dim + 2 * z_dim)   # dbl-buffered r, mu, sigma
    single_buffer_weights = (2 * weight_bytes + stream_bytes) > (12 << 20)
    w_kwargs = {"pipeline_mode": pl.Buffered(1)} if single_buffer_weights else {}
    w_bufs = 1 if single_buffer_weights else 2
    vmem_needed = stream_bytes + w_bufs * weight_bytes + (2 << 20)   # + headroom

    compiler_kwargs = {}
    if vmem_needed > (16 << 20):   # above the smallest (v5e) scoped default
        compiler_kwargs["vmem_limit_bytes"] = int(min(vmem_needed, 64 << 20))

    # ---- cost estimate (advisory) -------------------------------------------
    flops = 2 * batch * r_dim * (r_dim + 2 * z_dim)
    bytes_accessed = itemsize * (batch * (r_dim + 2 * z_dim)      # r in, mu/sigma out
                                 + r_dim * (r_dim + 2 * z_dim)    # weights
                                 + r_dim + 2 * z_dim)             # biases
    cost = pl.CostEstimate(flops=flops, transcendentals=batch * z_dim,
                           bytes_accessed=bytes_accessed)

    mu, sigma = pl.pallas_call(
        mu_sigma_kernel,
        out_shape=(jax.ShapeDtypeStruct((batch, z_dim), r.dtype),
                   jax.ShapeDtypeStruct((batch, z_dim), r.dtype)),
        grid=grid,
        in_specs=[
            pl.BlockSpec((tb, r_dim), lambda i: (i, 0)),                  # r: streamed
            pl.BlockSpec((r_dim, r_dim), lambda i: (0, 0), **w_kwargs),   # W1: resident
            pl.BlockSpec((1, r_dim), lambda i: (0, 0), **w_kwargs),       # b1
            pl.BlockSpec((r_dim, z_dim), lambda i: (0, 0), **w_kwargs),   # Wmu
            pl.BlockSpec((1, z_dim), lambda i: (0, 0), **w_kwargs),       # bmu
            pl.BlockSpec((r_dim, z_dim), lambda i: (0, 0), **w_kwargs),   # Wsig
            pl.BlockSpec((1, z_dim), lambda i: (0, 0), **w_kwargs),       # bsig
        ],
        out_specs=(pl.BlockSpec((tb, z_dim), lambda i: (i, 0)),
                   pl.BlockSpec((tb, z_dim), lambda i: (i, 0))),
        compiler_params=pltpu.CompilerParams(
            dimension_semantics=("parallel",), **compiler_kwargs),
        cost_estimate=cost,
    )(r, params["w1"], params["b1"], params["wmu"], params["bmu"],
      params["wsig"], params["bsig"])
    return mu, sigma


def init_params(key, r_dim, z_dim):
    """Deterministic init mimicking nn.Linear (uniform +-1/sqrt(fan_in)).

    Weights stored transposed: (in_dim, out_dim). Biases as (1, out_dim)."""
    k1, k2, k3, k4, k5, k6 = jax.random.split(key, 6)
    bound = 1.0 / jnp.sqrt(r_dim)
    w1 = jax.random.uniform(k1, (r_dim, r_dim), jnp.float32, -bound, bound)
    b1 = jax.random.uniform(k2, (1, r_dim), jnp.float32, -bound, bound)
    wmu = jax.random.uniform(k3, (r_dim, z_dim), jnp.float32, -bound, bound)
    bmu = jax.random.uniform(k4, (1, z_dim), jnp.float32, -bound, bound)
    wsig = jax.random.uniform(k5, (r_dim, z_dim), jnp.float32, -bound, bound)
    bsig = jax.random.uniform(k6, (1, z_dim), jnp.float32, -bound, bound)
    return {"w1": w1, "b1": b1, "wmu": wmu, "bmu": bmu, "wsig": wsig, "bsig": bsig}


def reference(r, p):
    h = jnp.maximum(r @ p["w1"] + p["b1"], 0.0)
    mu = h @ p["wmu"] + p["bmu"]
    sigma = 0.1 + 0.9 * jax.nn.sigmoid(h @ p["wsig"] + p["bsig"])
    return mu, sigma


if __name__ == "__main__":
    r_dim, z_dim = 32, 16
    key = jax.random.PRNGKey(0)
    kp, kr1, kr2, kr3 = jax.random.split(key, 4)
    params = init_params(kp, r_dim, z_dim)

    encode = jax.jit(mu_sigma_encoder, static_argnames=("block_batch",))

    def check(r, mu, sigma):
        mu_ref, sigma_ref = reference(r, params)
        assert mu.shape == mu_ref.shape and sigma.shape == sigma_ref.shape
        assert jnp.allclose(mu, mu_ref, atol=1e-5, rtol=1e-5)
        assert jnp.allclose(sigma, sigma_ref, atol=1e-5, rtol=1e-5)
        assert bool(jnp.all(sigma >= 0.1)) and bool(jnp.all(sigma <= 1.0))

    # Case 1: tiny batch, single full-extent block (grid == 1).
    r1 = jax.random.normal(kr1, (8, r_dim), jnp.float32)
    mu1, sigma1 = encode(r1, params)
    jax.block_until_ready((mu1, sigma1))
    check(r1, mu1, sigma1)

    # Case 2: batch not a multiple of the tile -> ragged last block, grid > 1.
    r2 = jax.random.normal(kr2, (20, r_dim), jnp.float32)
    mu2, sigma2 = encode(r2, params, block_batch=8)
    jax.block_until_ready((mu2, sigma2))
    check(r2, mu2, sigma2)

    # Case 3: default block_batch with batch < tile -> exercises the
    # "split so grid >= 2" (v7x megacore) path + ragged last block.
    r3 = jax.random.normal(kr3, (100, r_dim), jnp.float32)
    mu3, sigma3 = encode(r3, params)
    jax.block_until_ready((mu3, sigma3))
    check(r3, mu3, sigma3)

    # TODO(synk): torch.distributions.Normal wrapper has no Pallas equivalent;
    # the kernel returns the (mu, sigma) parameters instead.
    print("KERNEL_OK")
</pallas_src>

<mosaic_0001>
module attributes {stable_mosaic.version = 11 : i64} {
  func.func @mu_sigma_kernel(%arg0: i32, %arg1: memref<8x32xf32, #tpu.memory_space<vmem>>, %arg2: memref<32x32xf32, #tpu.memory_space<vmem>>, %arg3: memref<1x32xf32, #tpu.memory_space<vmem>>, %arg4: memref<32x16xf32, #tpu.memory_space<vmem>>, %arg5: memref<1x16xf32, #tpu.memory_space<vmem>>, %arg6: memref<32x16xf32, #tpu.memory_space<vmem>>, %arg7: memref<1x16xf32, #tpu.memory_space<vmem>>, %arg8: memref<8x16xf32, #tpu.memory_space<vmem>>, %arg9: memref<8x16xf32, #tpu.memory_space<vmem>>) attributes {dimension_semantics = [#tpu.dimension_semantics<parallel>], iteration_bounds = array<i64: 1>, scalar_prefetch = 0 : i64, scratch_operands = 0 : i64, tpu.core_type = #tpu.core_type<tc>, window_params = [{transform_indices = @transform_0, window_bounds = array<i64: 8, 32>}, {pipeline_mode = #tpu.pipeline_mode<synchronous>, transform_indices = @transform_1, window_bounds = array<i64: 32, 32>}, {pipeline_mode = #tpu.pipeline_mode<synchronous>, transform_indices = @transform_2, window_bounds = array<i64: 1, 32>}, {pipeline_mode = #tpu.pipeline_mode<synchronous>, transform_indices = @transform_3, window_bounds = array<i64: 32, 16>}, {pipeline_mode = #tpu.pipeline_mode<synchronous>, transform_indices = @transform_4, window_bounds = array<i64: 1, 16>}, {pipeline_mode = #tpu.pipeline_mode<synchronous>, transform_indices = @transform_5, window_bounds = array<i64: 32, 16>}, {pipeline_mode = #tpu.pipeline_mode<synchronous>, transform_indices = @transform_6, window_bounds = array<i64: 1, 16>}, {transform_indices = @transform_7, window_bounds = array<i64: 8, 16>}, {transform_indices = @transform_8, window_bounds = array<i64: 8, 16>}]} {
    %c0 = arith.constant 0 : index
    %c0_0 = arith.constant 0 : index
    %0 = vector.load %arg1[%c0, %c0_0] : memref<8x32xf32, #tpu.memory_space<vmem>>, vector<8x32xf32>
    %c0_1 = arith.constant 0 : index
    %c0_2 = arith.constant 0 : index
    %1 = vector.load %arg2[%c0_1, %c0_2] : memref<32x32xf32, #tpu.memory_space<vmem>>, vector<32x32xf32>
    %cst = arith.constant dense<0.000000e+00> : vector<8x32xf32>
    %2 = tpu.matmul %0, %1, %cst {dimension_numbers = #tpu.dot_dimension_numbers<[1], [0], [0], [1], [0, 0, 1, 1], [], []>} : vector<8x32xf32>, vector<32x32xf32>, vector<8x32xf32> -> vector<8x32xf32>
    %c0_3 = arith.constant 0 : index
    %c0_4 = arith.constant 0 : index
    %3 = vector.load %arg3[%c0_3, %c0_4] : memref<1x32xf32, #tpu.memory_space<vmem>>, vector<1x32xf32>
    %4 = vector.broadcast %3 : vector<1x32xf32> to vector<8x32xf32>
    %5 = arith.addf %2, %4 : vector<8x32xf32>
    %cst_5 = arith.constant 0.000000e+00 : f32
    %6 = vector.broadcast %cst_5 : f32 to vector<8x32xf32>
    %7 = arith.maximumf %5, %6 : vector<8x32xf32>
    %c0_6 = arith.constant 0 : index
    %c0_7 = arith.constant 0 : index
    %8 = vector.load %arg4[%c0_6, %c0_7] : memref<32x16xf32, #tpu.memory_space<vmem>>, vector<32x16xf32>
    %cst_8 = arith.constant dense<0.000000e+00> : vector<8x16xf32>
    %9 = tpu.matmul %7, %8, %cst_8 {dimension_numbers = #tpu.dot_dimension_numbers<[1], [0], [0], [1], [0, 0, 1, 1], [], []>} : vector<8x32xf32>, vector<32x16xf32>, vector<8x16xf32> -> vector<8x16xf32>
    %c0_9 = arith.constant 0 : index
    %c0_10 = arith.constant 0 : index
    %10 = vector.load %arg5[%c0_9, %c0_10] : memref<1x16xf32, #tpu.memory_space<vmem>>, vector<1x16xf32>
    %11 = vector.broadcast %10 : vector<1x16xf32> to vector<8x16xf32>
    %12 = arith.addf %9, %11 : vector<8x16xf32>
    %c0_11 = arith.constant 0 : index
    %c0_12 = arith.constant 0 : index
    %13 = vector.load %arg8[%c0_11, %c0_12] : memref<8x16xf32, #tpu.memory_space<vmem>>, vector<8x16xf32>
    tpu.vector_store %arg8[%c0_11, %c0_12], %12 {strides = array<i32>} : memref<8x16xf32, #tpu.memory_space<vmem>>, vector<8x16xf32>,
    %c0_13 = arith.constant 0 : index
    %c0_14 = arith.constant 0 : index
    %14 = vector.load %arg6[%c0_13, %c0_14] : memref<32x16xf32, #tpu.memory_space<vmem>>, vector<32x16xf32>
    %cst_15 = arith.constant dense<0.000000e+00> : vector<8x16xf32>
    %15 = tpu.matmul %7, %14, %cst_15 {dimension_numbers = #tpu.dot_dimension_numbers<[1], [0], [0], [1], [0, 0, 1, 1], [], []>} : vector<8x32xf32>, vector<32x16xf32>, vector<8x16xf32> -> vector<8x16xf32>
    %c0_16 = arith.constant 0 : index
    %c0_17 = arith.constant 0 : index
    %16 = vector.load %arg7[%c0_16, %c0_17] : memref<1x16xf32, #tpu.memory_space<vmem>>, vector<1x16xf32>
    %17 = vector.broadcast %16 : vector<1x16xf32> to vector<8x16xf32>
    %18 = arith.addf %15, %17 : vector<8x16xf32>
    %19 = arith.negf %18 : vector<8x16xf32>
    %20 = math.exp %19 : vector<8x16xf32>
    %cst_18 = arith.constant 1.000000e+00 : f32
    %21 = vector.broadcast %cst_18 : f32 to vector<8x16xf32>
    %22 = arith.addf %21, %20 : vector<8x16xf32>
    %23 = arith.divf %21, %22 : vector<8x16xf32>
    %cst_19 = arith.constant 0.899999976 : f32
    %24 = vector.broadcast %cst_19 : f32 to vector<8x16xf32>
    %25 = arith.mulf %24, %23 : vector<8x16xf32>
    %cst_20 = arith.constant 1.000000e-01 : f32
    %26 = vector.broadcast %cst_20 : f32 to vector<8x16xf32>
    %27 = arith.addf %26, %25 : vector<8x16xf32>
    %c0_21 = arith.constant 0 : index
    %c0_22 = arith.constant 0 : index
    %28 = vector.load %arg9[%c0_21, %c0_22] : memref<8x16xf32, #tpu.memory_space<vmem>>, vector<8x16xf32>
    tpu.vector_store %arg9[%c0_21, %c0_22], %27 {strides = array<i32>} : memref<8x16xf32, #tpu.memory_space<vmem>>, vector<8x16xf32>,
    return
  }
  func.func @transform_0(%arg0: i32) -> (i32, i32) {
    %c0_i32 = arith.constant 0 : i32
    %c0_i32_0 = arith.constant 0 : i32
    return %arg0, %c0_i32 : i32, i32
  }
  func.func @transform_1(%arg0: i32) -> (i32, i32) {
    %c0_i32 = arith.constant 0 : i32
    %c0_i32_0 = arith.constant 0 : i32
    %c0_i32_1 = arith.constant 0 : i32
    return %c0_i32, %c0_i32_0 : i32, i32
  }
  func.func @transform_2(%arg0: i32) -> (i32, i32) {
    %c0_i32 = arith.constant 0 : i32
    %c0_i32_0 = arith.constant 0 : i32
    %c0_i32_1 = arith.constant 0 : i32
    return %c0_i32, %c0_i32_0 : i32, i32
  }
  func.func @transform_3(%arg0: i32) -> (i32, i32) {
    %c0_i32 = arith.constant 0 : i32
    %c0_i32_0 = arith.constant 0 : i32
    %c0_i32_1 = arith.constant 0 : i32
    return %c0_i32, %c0_i32_0 : i32, i32
  }
  func.func @transform_4(%arg0: i32) -> (i32, i32) {
    %c0_i32 = arith.constant 0 : i32
    %c0_i32_0 = arith.constant 0 : i32
    %c0_i32_1 = arith.constant 0 : i32
    return %c0_i32, %c0_i32_0 : i32, i32
  }
  func.func @transform_5(%arg0: i32) -> (i32, i32) {
    %c0_i32 = arith.constant 0 : i32
    %c0_i32_0 = arith.constant 0 : i32
    %c0_i32_1 = arith.constant 0 : i32
    return %c0_i32, %c0_i32_0 : i32, i32
  }
  func.func @transform_6(%arg0: i32) -> (i32, i32) {
    %c0_i32 = arith.constant 0 : i32
    %c0_i32_0 = arith.constant 0 : i32
    %c0_i32_1 = arith.constant 0 : i32
    return %c0_i32, %c0_i32_0 : i32, i32
  }
  func.func @transform_7(%arg0: i32) -> (i32, i32) {
    %c0_i32 = arith.constant 0 : i32
    %c0_i32_0 = arith.constant 0 : i32
    return %arg0, %c0_i32 : i32, i32
  }
  func.func @transform_8(%arg0: i32) -> (i32, i32) {
    %c0_i32 = arith.constant 0 : i32
    %c0_i32_0 = arith.constant 0 : i32
    return %arg0, %c0_i32 : i32, i32
  }
}

</mosaic_0001>

<llo_original>
// kernel: mu_sigma_encoder.1
$region0: #{mu_sigma_encoder.1}
  #allocation0 [shape = 'u32[]', space=smem, size = 0x4, offset = 0x4, fixed_abs, tag = 'smem constant byte address 0x4 - core index']
  #allocation1 [shape = 'u32[72,128]{1,0:T(1,128)}', space=vmem, size = 0x9000, scoped, tag = 'internal scratch']
  %s0 = inlined_call_operand.vmem [shape: f32[8,32], index: 0, kind: input, shape index: {}]
  %s1 = inlined_call_operand.vmem [shape: f32[32,32], index: 1, kind: input, shape index: {}]
  %s2 = inlined_call_operand.vmem [shape: f32[1,32], index: 2, kind: input, shape index: {}]
  %s3 = inlined_call_operand.vmem [shape: f32[32,16], index: 3, kind: input, shape index: {}]
  %s4 = inlined_call_operand.vmem [shape: f32[1,16], index: 4, kind: input, shape index: {}]
  %s5 = inlined_call_operand.vmem [shape: f32[32,16], index: 5, kind: input, shape index: {}]
  %s6 = inlined_call_operand.vmem [shape: f32[1,16], index: 6, kind: input, shape index: {}]
  %s7 = inlined_call_operand.hbm [shape: f32[8,16], index: 7, kind: output, shape index: {0}]
  %s8 = inlined_call_operand.hbm [shape: f32[8,16], index: 8, kind: output, shape index: {1}]
  %9 = xla_tuple %s7, %s8
  %s10 = sld [smem:[#allocation0]]
  $region46: #{mu_sigma_encoder.1} parent=0
    _
  %s12 = ssub.s32 1, %s10
  %s13 = scalar_select 0, %s12, %s10
  $region1: #{mu_sigma_encoder.1} parent=0
    #allocation2 [shape = 'u8[4096]{0}', space=vmem, size = 0x1000, scoped, tag = 'output window, operand 0, single buffered']
    #allocation3 [shape = 's32[1]{0}', space=sflag, size = 0x4, scoped, tag = 'scoped memory for mu_sigma_encoder.1']
    #allocation4 [shape = 'u8[4096]{0}', space=vmem, size = 0x1000, scoped, tag = 'output window, operand 1, single buffered']
    #allocation5 [shape = 's32[1]{0}', space=sflag, size = 0x4, scoped, tag = 'scoped memory for mu_sigma_encoder.1']
    %14 = vsyncpa [#allocation3], 0
    %15 = vsyncpa [#allocation5], 0
    // Predicated region
    $region2: #{mu_sigma_encoder.1} parent=1 // pred_check
      _
    $region3: #{mu_sigma_encoder.1} parent=1 // pred_check_branch
      %17 = sbr.rel (0) target = $region5
    $region4: #{mu_sigma_encoder.1} parent=1 // pred_region
      _
    $region5: #{mu_sigma_encoder.1} parent=1 // pred_fallthru
      _
    // Predicated region
    $region6: #{mu_sigma_encoder.1} parent=1 // pred_check
      _
    $region7: #{mu_sigma_encoder.1} parent=1 // pred_check_branch
      %19 = sbr.rel (0) target = $region9
    $region8: #{mu_sigma_encoder.1} parent=1 // pred_region
      _
    $region9: #{mu_sigma_encoder.1} parent=1 // pred_fallthru
      _
    // Predicated region
    $region10: #{mu_sigma_encoder.1} parent=1 // pred_check
      _
    $region11: #{mu_sigma_encoder.1} parent=1 // pred_check_branch
      %21 = sbr.rel (0) target = $region13
    $region12: #{mu_sigma_encoder.1} parent=1 // pred_region
      _
    $region13: #{mu_sigma_encoder.1} parent=1 // pred_fallthru
      _
    // Predicated region
    $region14: #{mu_sigma_encoder.1} parent=1 // pred_check
      _
    $region15: #{mu_sigma_encoder.1} parent=1 // pred_check_branch
      %23 = sbr.rel (0) target = $region17
    $region16: #{mu_sigma_encoder.1} parent=1 // pred_region
      _
    $region17: #{mu_sigma_encoder.1} parent=1 // pred_fallthru
      _
    // Predicated region
    $region18: #{mu_sigma_encoder.1} parent=1 // pred_check
      _
    $region19: #{mu_sigma_encoder.1} parent=1 // pred_check_branch
      %25 = sbr.rel (0) target = $region21
    $region20: #{mu_sigma_encoder.1} parent=1 // pred_region
      _
    $region21: #{mu_sigma_encoder.1} parent=1 // pred_fallthru
      _
    // Predicated region
    $region22: #{mu_sigma_encoder.1} parent=1 // pred_check
      _
    $region23: #{mu_sigma_encoder.1} parent=1 // pred_check_branch
      %27 = sbr.rel (0) target = $region25
    $region24: #{mu_sigma_encoder.1} parent=1 // pred_region
      _
    $region25: #{mu_sigma_encoder.1} parent=1 // pred_fallthru
      _
    // Predicated region
    $region26: #{mu_sigma_encoder.1} parent=1 // pred_check
      _
    $region27: #{mu_sigma_encoder.1} parent=1 // pred_check_branch
      %29 = sbr.rel (0) target = $region29
    $region28: #{mu_sigma_encoder.1} parent=1 // pred_region
      _
    $region29: #{mu_sigma_encoder.1} parent=1 // pred_fallthru
      _
    %v30 = vld [vmem:[%s0] sm:$0xff]
    %v31 = vld [vmem:[%s1] sm:$0xff]
    %v32 = vld [vmem:[%s1 + $0x8] sm:$0xff]
    %v33 = vld [vmem:[%s1 + $0x10] sm:$0xff]
    %v34 = vld [vmem:[%s1 + $0x18] sm:$0xff]
    %v35 = vld [vmem:[%s2] sm:$0x1]
    %v37 = vperm.slane %v35, 0
    %vm39 = vcmask 261120
    %v41 = vsel %vm39, %v30, 0
    %43 = vmatpush.msra.mxu0 0.0
    %44 = vmatpush.msra.mxu0 0.0
    %45 = vmatpush.msra.mxu0 0.0
    %46 = vmatpush.msra.mxu0 0.0
    %47 = vmatpush.msra.mxu0 0.0
    %48 = vmatpush.msra.mxu0 0.0
    %49 = vmatpush.msra.mxu0 0.0
    %50 = vmatpush.msra.mxu0 0.0
    %51 = vmatpush.msra.mxu0 0.0
    %52 = vmatpush.msra.mxu0 0.0
    %53 = vmatpush.msra.mxu0 0.0
    %54 = vmatpush.msra.mxu0 0.0
    %55 = vmatpush.msra.mxu0 %v34
    %56 = vmatpush.msra.mxu0 %v33
    %57 = vmatpush.msra.mxu0 %v32
    %58 = vmatpush.msra.mxu0 %v31
    %59 = vmatmul.f32.gmra.mxu0 %v41
    %v60 = vpop.f32.mrf.mxu0
    %v61 = vadd.f32 %v37, %v60
    %62 = vdwg.mxu0
    %v63 = vmax.f32 %v61, 0.0
    %v64 = vld [vmem:[%s3] sm:$0xff]
    %v65 = vld [vmem:[%s3 + $0x8] sm:$0xff]
    %v66 = vld [vmem:[%s3 + $0x10] sm:$0xff]
    %v67 = vld [vmem:[%s3 + $0x18] sm:$0xff]
    %v68 = vld [vmem:[%s4] sm:$0x1]
    %v70 = vperm.slane %v68, 0
    %v73 = vsel %vm39, %v63, 0
    %75 = vmatpush.msra.mxu0 0.0
    %76 = vmatpush.msra.mxu0 0.0
    %77 = vmatpush.msra.mxu0 0.0
    %78 = vmatpush.msra.mxu0 0.0
    %79 = vmatpush.msra.mxu0 0.0
    %80 = vmatpush.msra.mxu0 0.0
    %81 = vmatpush.msra.mxu0 0.0
    %82 = vmatpush.msra.mxu0 0.0
    %83 = vmatpush.msra.mxu0 0.0
    %84 = vmatpush.msra.mxu0 0.0
    %85 = vmatpush.msra.mxu0 0.0
    %86 = vmatpush.msra.mxu0 0.0
    %87 = vmatpush.msra.mxu0 %v67
    %88 = vmatpush.msra.mxu0 %v66
    %89 = vmatpush.msra.mxu0 %v65
    %90 = vmatpush.msra.mxu0 %v64
    %91 = vmatmul.f32.gmra.mxu0 %v73
    %v92 = vpop.f32.mrf.mxu0
    %v93 = vadd.f32 %v70, %v92
    %94 = vdwg.mxu0
    %vm95 = vcmask 130048
    %96 = vst.msk [vmem:[#allocation2] sm:$0xff] %vm95, %v93
    %v97 = vld [vmem:[%s5] sm:$0xff]
    %v98 = vld [vmem:[%s5 + $0x8] sm:$0xff]
    %v99 = vld [vmem:[%s5 + $0x10] sm:$0xff]
    %v100 = vld [vmem:[%s5 + $0x18] sm:$0xff]
    %v101 = vld [vmem:[%s6] sm:$0x1]
    %v103 = vperm.slane %v101, 0
    %105 = vmatpush.msra.mxu0 0.0
    %106 = vmatpush.msra.mxu0 0.0
    %107 = vmatpush.msra.mxu0 0.0
    %108 = vmatpush.msra.mxu0 0.0
    %109 = vmatpush.msra.mxu0 0.0
    %110 = vmatpush.msra.mxu0 0.0
    %111 = vmatpush.msra.mxu0 0.0
    %112 = vmatpush.msra.mxu0 0.0
    %113 = vmatpush.msra.mxu0 0.0
    %114 = vmatpush.msra.mxu0 0.0
    %115 = vmatpush.msra.mxu0 0.0
    %116 = vmatpush.msra.mxu0 0.0
    %117 = vmatpush.msra.mxu0 %v100
    %118 = vmatpush.msra.mxu0 %v99
    %119 = vmatpush.msra.mxu0 %v98
    %120 = vmatpush.msra.mxu0 %v97
    %121 = vmatmul.f32.gmra.mxu0 %v73
    %v122 = vpop.f32.mrf.mxu0
    %v123 = vadd.f32 %v103, %v122
    %124 = vdwg.mxu0
    %v125 = vxor.u32 %v123, 2147483648
    %v126 = vmul.f32 %v125, 1.442695
    %v127 = vpow.pop %v126
    %v128 = vadd.f32 %v127, 1.0
    %v129 = vrcp.pop %v128
    %v130 = vmul.f32 %v128, %v129
    %v131 = vsub.f32 1.0, %v130
    %v132 = vmul.f32 %v129, %v131
    %v133 = vadd.f32 %v129, %v132
    %vm134 = vweird.f32 %v128
    %vm135 = vweird.f32 %v129
    %vm136 = vmor %vm134, %vm135
    %v137 = vsel %vm136, %v129, %v133
    %v138 = vand.u32 2147483647, %v128
    %vm139 = vcmp.eq.f32.partialorder %v138, 8.507059e+37
    %v140 = vand.u32 %v128, 2147483648
    %v141 = vor.u32 1.1754944e-38, %v140
    %v142 = vsel %vm139, %v141, %v137
    %v143 = vmul.f32 1.0, %v142
    %v144 = vmul.f32 %v143, 0.9
    %v145 = vadd.f32 %v144, 0.1
    %146 = vst.msk [vmem:[#allocation4] sm:$0xff] %vm95, %v145
    // Predicated region
    $region30: #{mu_sigma_encoder.1} parent=1 // pred_check
      _
    $region31: #{mu_sigma_encoder.1} parent=1 // pred_check_branch
      %148 = sbr.rel (0) target = $region33
    $region32: #{mu_sigma_encoder.1} parent=1 // pred_region
      %150 = vsyncadd [#allocation3], 0
      %s152 = sshll.u32 [#allocation2], 4
      %s153 = int_to_ptr.vmem [resolvable:$true] %s152
      %s154 = sshll.u32 %s7, 4
      %s155 = int_to_ptr.hbm [resolvable:$true] %s154
      %157 = dma.vmem_to_hbm [thread:$0]  %s153, 128, %s155, [#allocation3]
    $region33: #{mu_sigma_encoder.1} parent=1 // pred_fallthru
      _
    // Predicated region
    $region34: #{mu_sigma_encoder.1} parent=1 // pred_check
      _
    $region35: #{mu_sigma_encoder.1} parent=1 // pred_check_branch
      %159 = sbr.rel (0) target = $region37
    $region36: #{mu_sigma_encoder.1} parent=1 // pred_region
      %161 = vsyncadd [#allocation5], 0
      %s163 = sshll.u32 [#allocation4], 4
      %s164 = int_to_ptr.vmem [resolvable:$true] %s163
      %s165 = sshll.u32 %s8, 4
      %s166 = int_to_ptr.hbm [resolvable:$true] %s165
      %168 = dma.vmem_to_hbm [thread:$0]  %s164, 128, %s166, [#allocation5]
    $region37: #{mu_sigma_encoder.1} parent=1 // pred_fallthru
      _
    // Predicated region
    $region38: #{mu_sigma_encoder.1} parent=1 // pred_check
      _
    $region39: #{mu_sigma_encoder.1} parent=1 // pred_check_branch
      %170 = sbr.rel (0) target = $region41
    $region40: #{mu_sigma_encoder.1} parent=1 // pred_region
      %172 = dma.done [#allocation3], 128
    $region41: #{mu_sigma_encoder.1} parent=1 // pred_fallthru
      _
    // Predicated region
    $region42: #{mu_sigma_encoder.1} parent=1 // pred_check
      _
    $region43: #{mu_sigma_encoder.1} parent=1 // pred_check_branch
      %174 = sbr.rel (0) target = $region45
    $region44: #{mu_sigma_encoder.1} parent=1 // pred_region
      %176 = dma.done [#allocation5], 128
    $region45: #{mu_sigma_encoder.1} parent=1 // pred_fallthru
      _
    %177 = vsyncpa [#allocation3], 1
    %178 = vsyncpa [#allocation5], 1

</llo_original>
